<compile_context>
chip_gen: v7x
topology: tpu7x:2x2x1
jax: 0.10.0
libtpu: 0.0.40
codegen_flags: <defaults>
</compile_context>

<pallas_src>
import functools
import math

import jax
import jax.numpy as jnp
from jax import lax
from jax.experimental import pallas as pl
from jax.experimental.pallas import tpu as pltpu

_INV_SQRT2 = 1.0 / math.sqrt(2.0)
_SQRT_2_OVER_PI = math.sqrt(2.0 / math.pi)


def _gelu(h, approximate):
    if approximate:
        # tanh approximation: exp/tanh go to the EUP slot (cheap next to MXU).
        inner = _SQRT_2_OVER_PI * (h + 0.044715 * (h * h * h))
        return 0.5 * h * (1.0 + jnp.tanh(inner))
    # Exact erf GELU — matches torch.nn.functional.gelu default.
    return 0.5 * h * (1.0 + lax.erf(h * _INV_SQRT2))


# --------------------------------------------------------------------------
# Kernels
# --------------------------------------------------------------------------

def _ffn_fused_kernel(x_ref, w1_ref, b1_ref, w2_ref, b2_ref, o_ref, *,
                      approximate, gelu_dtype):
    # Weights fully VMEM-resident; grid = (row_tiles,).
    h = jnp.dot(x_ref[...], w1_ref[...], preferred_element_type=jnp.float32)
    h = h.astype(gelu_dtype) + b1_ref[...].astype(gelu_dtype)
    h = _gelu(h, approximate)
    y = jnp.dot(h.astype(w2_ref.dtype), w2_ref[...],
                preferred_element_type=jnp.float32)
    o_ref[...] = (y + b2_ref[...].astype(jnp.float32)).astype(o_ref.dtype)


def _ffn_streamed_kernel(x_ref, w1_ref, b1_ref, w2_ref, b2_ref, o_ref, acc_ref,
                         *, approximate, gelu_dtype):
    # Grid = (row_tiles, dim_ff_tiles); dim_ff is the trailing reduction axis.
    f = pl.program_id(1)

    @pl.when(f == 0)
    def _init():
        acc_ref[...] = jnp.zeros_like(acc_ref)

    h = jnp.dot(x_ref[...], w1_ref[...], preferred_element_type=jnp.float32)
    h = h.astype(gelu_dtype) + b1_ref[...].astype(gelu_dtype)
    h = _gelu(h, approximate)
    acc_ref[...] += jnp.dot(h.astype(w2_ref.dtype), w2_ref[...],
                            preferred_element_type=jnp.float32)

    @pl.when(f == pl.num_programs(1) - 1)
    def _finalize():
        o_ref[...] = (acc_ref[...] + b2_ref[...].astype(jnp.float32)).astype(o_ref.dtype)


# --------------------------------------------------------------------------
# Tiling / hardware helpers
# --------------------------------------------------------------------------

def _round_up(x, m):
    return ((x + m - 1) // m) * m


def _sublane_multiple(dtype):
    # f32 -> 8, bf16 -> 16, int8/fp8 -> 32 (narrow dtypes pack along sublanes).
    itemsize = jnp.dtype(dtype).itemsize
    return 8 * max(1, 4 // itemsize)


def _hw_config():
    """Generation-aware (vmem_budget_bytes, target_tm, target_tf, n_cores)."""
    kind = ""
    try:
        kind = (getattr(jax.devices()[0], "device_kind", "") or "").lower()
    except Exception:
        pass
    vmem_phys = None
    try:
        vmem_phys = getattr(pltpu.get_tpu_info(), "vmem_capacity_bytes", None)
        vmem_phys = int(vmem_phys) if vmem_phys else None
    except Exception:
        vmem_phys = None

    is_v7 = "v7" in kind
    if vmem_phys is None:
        vmem_phys = (64 if is_v7 else 128) * 1024 * 1024
    if is_v7:
        vmem_phys = min(vmem_phys, 64 * 1024 * 1024)  # per-TC VMEM on v7x

    # Never hand the compiler the entire physical VMEM (leave internal headroom).
    vmem_budget = vmem_phys - max(8 * 1024 * 1024, vmem_phys // 4)

    if is_v7:
        # ~620 flop/byte roofline; 64 MiB/TC -> shrink tf, keep both TCs busy.
        return vmem_budget, 512, 256, 2
    if "v5e" in kind or "v5 lite" in kind or "v5lite" in kind:
        # ~240 flop/byte roofline: tm=256 already compute-bound.
        return vmem_budget, 256, 1024, 1
    if "v4" in kind or "v5p" in kind:
        return vmem_budget, 512, 1024, 2
    # v6e / default: ~650 flop/byte roofline when streaming weights.
    return vmem_budget, 1024, 1024, 1


def _choose_row_tiling(M, mult, target_tm, n_cores):
    """Pick (tm, M_pad) minimizing wrapper-side padding; keep >=n_cores tiles."""
    if n_cores > 1 and M >= 2 * mult:
        half = _round_up(-(-M // n_cores), mult)
        target_tm = min(target_tm, max(mult, half))
    if M <= target_tm:
        # Block equals full array dims -> no (8,128) constraint, no padding.
        return M, M
    tm_cap = max(mult, (target_tm // mult) * mult)
    M_up = _round_up(M, mult)
    t = tm_cap
    while t >= mult:
        if M_up % t == 0:
            return t, M_up           # only the sublane rounding is padded
        t -= mult
    return tm_cap, _round_up(M, tm_cap)


def _fits_fused(tm, dim, dim_ff, x_it, w_it, o_it, budget):
    wbytes = 2 * dim * dim_ff * w_it                 # W1 + W2
    use = 2 * wbytes                                 # conservative: double-buffered
    use += 2 * tm * dim * (x_it + o_it)              # x / out tiles (double-buffered)
    use += tm * dim_ff * 4                           # h intermediate (f32)
    use += 2 * (dim_ff + dim) * 4                    # biases
    return use <= budget


def _choose_tf(dim_ff, target_tf, tm, dim, x_it, w_it, o_it, budget):
    tf_max = max(128, min(_round_up(dim_ff, 128), (target_tf // 128) * 128))

    def usage(tf):
        return (2 * tm * dim * (x_it + o_it)         # x / out tiles
                + tm * dim * 4                       # f32 accumulator
                + 2 * 2 * dim * tf * w_it            # W1/W2 slices, double-buffered
                + tm * tf * 4                        # h intermediate (f32)
                + 2 * tf * 4 + dim * 4)              # biases

    tf = tf_max
    while tf > 128 and usage(tf) > budget:
        tf -= 128
    # Prefer a tf that divides dim_ff exactly (avoids padding the weights).
    t = tf
    while t >= 128:
        if dim_ff % t == 0:
            return t
        t -= 128
    return tf


# --------------------------------------------------------------------------
# Wrapper
# --------------------------------------------------------------------------

def position_wise_feed_forward(x, w1, b1, w2, b2, *,
                               approximate_gelu=False,
                               gelu_dtype=None,
                               matmul_in_bf16=False,
                               force_streamed_tf=None):
    """x: (B, S, dim); w1: (dim, dim_ff); b1: (dim_ff,); w2: (dim_ff, dim); b2: (dim,)."""
    B, S, dim = x.shape
    dim_in, dim_ff = w1.shape
    assert dim_in == dim and w2.shape == (dim_ff, dim)
    assert b1.shape == (dim_ff,) and b2.shape == (dim,)

    out_dtype = x.dtype
    if matmul_in_bf16 and x.dtype == jnp.float32:
        # Optional accuracy/perf trade: bf16 MXU operands, f32 accumulation.
        x = x.astype(jnp.bfloat16)
        w1 = w1.astype(jnp.bfloat16)
        w2 = w2.astype(jnp.bfloat16)
    gelu_dt = jnp.float32 if gelu_dtype is None else jnp.dtype(gelu_dtype)

    M = B * S
    mult = _sublane_multiple(x.dtype)
    vmem_budget, target_tm, target_tf, n_cores = _hw_config()
    tm, M_pad = _choose_row_tiling(M, mult, target_tm, n_cores)
    n_m = M_pad // tm

    x2d = x.reshape(M, dim)
    if M_pad != M:
        # Only a sub-tile worth of zero rows; discarded after the kernel.
        x2d = jnp.pad(x2d, ((0, M_pad - M), (0, 0)))

    b1_2d = b1.reshape(1, dim_ff)
    b2_2d = b2.reshape(1, dim)

    x_it = jnp.dtype(x2d.dtype).itemsize
    w_it = jnp.dtype(w1.dtype).itemsize
    o_it = jnp.dtype(out_dtype).itemsize

    use_fused = (force_streamed_tf is None and
                 _fits_fused(tm, dim, dim_ff, x_it, w_it, o_it, vmem_budget))

    if use_fused:
        kernel = functools.partial(_ffn_fused_kernel,
                                   approximate=approximate_gelu,
                                   gelu_dtype=gelu_dt)
        out2d = pl.pallas_call(
            kernel,
            out_shape=jax.ShapeDtypeStruct((M_pad, dim), out_dtype),
            grid_spec=pltpu.PrefetchScalarGridSpec(
                num_scalar_prefetch=0,
                grid=(n_m,),
                in_specs=[
                    pl.BlockSpec((tm, dim), lambda i: (i, 0)),        # x rows
                    pl.BlockSpec((dim, dim_ff), lambda i: (0, 0)),    # W1 (resident)
                    pl.BlockSpec((1, dim_ff), lambda i: (0, 0)),      # b1 (resident)
                    pl.BlockSpec((dim_ff, dim), lambda i: (0, 0)),    # W2 (resident)
                    pl.BlockSpec((1, dim), lambda i: (0, 0)),         # b2 (resident)
                ],
                out_specs=pl.BlockSpec((tm, dim), lambda i: (i, 0)),
            ),
            compiler_params=pltpu.CompilerParams(
                dimension_semantics=("parallel",),
                vmem_limit_bytes=int(vmem_budget),
            ),
        )(x2d, w1, b1_2d, w2, b2_2d)
    else:
        if force_streamed_tf is not None:
            tf = max(128, (int(force_streamed_tf) // 128) * 128)
        else:
            tf = _choose_tf(dim_ff, target_tf, tm, dim, x_it, w_it, o_it, vmem_budget)
        F_pad = _round_up(dim_ff, tf)
        w1p, b1p, w2p = w1, b1_2d, w2
        if F_pad != dim_ff:
            # Zero-padded hidden columns contribute exactly 0 (gelu(0)=0).
            w1p = jnp.pad(w1, ((0, 0), (0, F_pad - dim_ff)))
            b1p = jnp.pad(b1_2d, ((0, 0), (0, F_pad - dim_ff)))
            w2p = jnp.pad(w2, ((0, F_pad - dim_ff), (0, 0)))
        n_f = F_pad // tf

        kernel = functools.partial(_ffn_streamed_kernel,
                                   approximate=approximate_gelu,
                                   gelu_dtype=gelu_dt)
        out2d = pl.pallas_call(
            kernel,
            out_shape=jax.ShapeDtypeStruct((M_pad, dim), out_dtype),
            grid_spec=pltpu.PrefetchScalarGridSpec(
                num_scalar_prefetch=0,
                grid=(n_m, n_f),
                in_specs=[
                    pl.BlockSpec((tm, dim), lambda i, f: (i, 0)),     # x rows
                    pl.BlockSpec((dim, tf), lambda i, f: (0, f)),     # W1 slice
                    pl.BlockSpec((1, tf), lambda i, f: (0, f)),       # b1 slice
                    pl.BlockSpec((tf, dim), lambda i, f: (f, 0)),     # W2 slice
                    pl.BlockSpec((1, dim), lambda i, f: (0, 0)),      # b2
                ],
                out_specs=pl.BlockSpec((tm, dim), lambda i, f: (i, 0)),
                scratch_shapes=[pltpu.VMEM((tm, dim), jnp.float32)],
            ),
            compiler_params=pltpu.CompilerParams(
                dimension_semantics=("parallel", "arbitrary"),
                vmem_limit_bytes=int(vmem_budget),
            ),
        )(x2d, w1p, b1p, w2p, b2_2d)

    if M_pad != M:
        out2d = out2d[:M]
    return out2d.reshape(B, S, dim)


# --------------------------------------------------------------------------
# Reference / test harness
# --------------------------------------------------------------------------

def _reference(x, w1, b1, w2, b2):
    xf = x.astype(jnp.float32)
    w1f, b1f = w1.astype(jnp.float32), b1.astype(jnp.float32)
    w2f, b2f = w2.astype(jnp.float32), b2.astype(jnp.float32)
    h = jnp.einsum("bsd,df->bsf", xf, w1f) + b1f
    h = 0.5 * h * (1.0 + lax.erf(h * _INV_SQRT2))
    return jnp.einsum("bsf,fd->bsd", h, w2f) + b2f


def _make_params(key, dim, dim_ff, dtype):
    kw1, kb1, kw2, kb2 = jax.random.split(key, 4)
    bound1 = 1.0 / math.sqrt(dim)
    bound2 = 1.0 / math.sqrt(dim_ff)
    w1 = jax.random.uniform(kw1, (dim, dim_ff), jnp.float32, -bound1, bound1).astype(dtype)
    b1 = jax.random.uniform(kb1, (dim_ff,), jnp.float32, -bound1, bound1).astype(dtype)
    w2 = jax.random.uniform(kw2, (dim_ff, dim), jnp.float32, -bound2, bound2).astype(dtype)
    b2 = jax.random.uniform(kb2, (dim,), jnp.float32, -bound2, bound2).astype(dtype)
    return w1, b1, w2, b2


if __name__ == "__main__":
    ffn = jax.jit(position_wise_feed_forward,
                  static_argnames=("approximate_gelu", "gelu_dtype",
                                   "matmul_in_bf16", "force_streamed_tf"))

    root = jax.random.PRNGKey(0)
    k1x, k1p, k2x, k2p = jax.random.split(root, 4)

    # Test 1: toy config matching the module spec (cfg.dim=32, cfg.dim_ff=64),
    # f32 — exercises the fused weights-resident path, no padding.
    B, S, dim, dim_ff = 2, 8, 32, 64
    x = jax.random.normal(k1x, (B, S, dim), dtype=jnp.float32)
    w1, b1, w2, b2 = _make_params(k1p, dim, dim_ff, jnp.float32)
    out = jax.block_until_ready(ffn(x, w1, b1, w2, b2))
    ref = _reference(x, w1, b1, w2, b2)
    assert out.shape == (B, S, dim)
    assert jnp.allclose(out, ref, atol=1e-5, rtol=1e-5), "f32 mismatch vs reference"

    # Test 2: bf16 path, M=6 not a sublane multiple (row block equals the full
    # flattened dim -> no wrapper pad), lane-dense dim >= 128.
    B2, S2, dim2, dim_ff2 = 2, 3, 128, 256
    x2 = jax.random.normal(k2x, (B2, S2, dim2), dtype=jnp.float32).astype(jnp.bfloat16)
    w1b, b1b, w2b, b2b = _make_params(k2p, dim2, dim_ff2, jnp.bfloat16)
    out2 = jax.block_until_ready(ffn(x2, w1b, b1b, w2b, b2b))
    ref2 = _reference(x2, w1b, b1b, w2b, b2b)
    assert out2.shape == (B2, S2, dim2)
    assert jnp.allclose(out2.astype(jnp.float32), ref2, atol=5e-2, rtol=5e-2), \
        "bf16 mismatch vs reference"

    # Test 3: force the streamed (dim_ff-reduction) path with tf=128 so the
    # accumulator init / single-b2-add / last-step writeback logic is exercised.
    out3 = jax.block_until_ready(
        ffn(x2, w1b, b1b, w2b, b2b, force_streamed_tf=128))
    assert jnp.allclose(out3.astype(jnp.float32), ref2, atol=5e-2, rtol=5e-2), \
        "streamed-path mismatch vs reference"

    print("KERNEL_OK")
</pallas_src>

<mosaic_0001>
module attributes {stable_mosaic.version = 11 : i64} {
  func.func @_ffn_fused_kernel(%arg0: i32, %arg1: memref<16x32xf32, #tpu.memory_space<vmem>>, %arg2: memref<32x64xf32, #tpu.memory_space<vmem>>, %arg3: memref<1x64xf32, #tpu.memory_space<vmem>>, %arg4: memref<64x32xf32, #tpu.memory_space<vmem>>, %arg5: memref<1x32xf32, #tpu.memory_space<vmem>>, %arg6: memref<16x32xf32, #tpu.memory_space<vmem>>) attributes {dimension_semantics = [#tpu.dimension_semantics<parallel>], iteration_bounds = array<i64: 1>, scalar_prefetch = 0 : i64, scratch_operands = 0 : i64, tpu.core_type = #tpu.core_type<tc>, window_params = [{transform_indices = @transform_0, window_bounds = array<i64: 16, 32>}, {pipeline_mode = #tpu.pipeline_mode<synchronous>, transform_indices = @transform_1, window_bounds = array<i64: 32, 64>}, {pipeline_mode = #tpu.pipeline_mode<synchronous>, transform_indices = @transform_2, window_bounds = array<i64: 1, 64>}, {pipeline_mode = #tpu.pipeline_mode<synchronous>, transform_indices = @transform_3, window_bounds = array<i64: 64, 32>}, {pipeline_mode = #tpu.pipeline_mode<synchronous>, transform_indices = @transform_4, window_bounds = array<i64: 1, 32>}, {transform_indices = @transform_5, window_bounds = array<i64: 16, 32>}]} {
    %c0 = arith.constant 0 : index
    %c0_0 = arith.constant 0 : index
    %0 = vector.load %arg1[%c0, %c0_0] : memref<16x32xf32, #tpu.memory_space<vmem>>, vector<16x32xf32>
    %c0_1 = arith.constant 0 : index
    %c0_2 = arith.constant 0 : index
    %1 = vector.load %arg2[%c0_1, %c0_2] : memref<32x64xf32, #tpu.memory_space<vmem>>, vector<32x64xf32>
    %cst = arith.constant dense<0.000000e+00> : vector<16x64xf32>
    %2 = tpu.matmul %0, %1, %cst {dimension_numbers = #tpu.dot_dimension_numbers<[1], [0], [0], [1], [0, 0, 1, 1], [], []>} : vector<16x32xf32>, vector<32x64xf32>, vector<16x64xf32> -> vector<16x64xf32>
    %c0_3 = arith.constant 0 : index
    %c0_4 = arith.constant 0 : index
    %3 = vector.load %arg3[%c0_3, %c0_4] : memref<1x64xf32, #tpu.memory_space<vmem>>, vector<1x64xf32>
    %4 = vector.broadcast %3 : vector<1x64xf32> to vector<16x64xf32>
    %5 = arith.addf %2, %4 : vector<16x64xf32>
    %cst_5 = arith.constant 5.000000e-01 : f32
    %6 = vector.broadcast %cst_5 : f32 to vector<16x64xf32>
    %7 = arith.mulf %6, %5 : vector<16x64xf32>
    %cst_6 = arith.constant 0.707106769 : f32
    %8 = vector.broadcast %cst_6 : f32 to vector<16x64xf32>
    %9 = arith.mulf %5, %8 : vector<16x64xf32>
    %10 = math.erf %9 : vector<16x64xf32>
    %cst_7 = arith.constant 1.000000e+00 : f32
    %11 = vector.broadcast %cst_7 : f32 to vector<16x64xf32>
    %12 = arith.addf %11, %10 : vector<16x64xf32>
    %13 = arith.mulf %7, %12 : vector<16x64xf32>
    %c0_8 = arith.constant 0 : index
    %c0_9 = arith.constant 0 : index
    %14 = vector.load %arg4[%c0_8, %c0_9] : memref<64x32xf32, #tpu.memory_space<vmem>>, vector<64x32xf32>
    %cst_10 = arith.constant dense<0.000000e+00> : vector<16x32xf32>
    %15 = tpu.matmul %13, %14, %cst_10 {dimension_numbers = #tpu.dot_dimension_numbers<[1], [0], [0], [1], [0, 0, 1, 1], [], []>} : vector<16x64xf32>, vector<64x32xf32>, vector<16x32xf32> -> vector<16x32xf32>
    %c0_11 = arith.constant 0 : index
    %c0_12 = arith.constant 0 : index
    %16 = vector.load %arg5[%c0_11, %c0_12] : memref<1x32xf32, #tpu.memory_space<vmem>>, vector<1x32xf32>
    %17 = vector.broadcast %16 : vector<1x32xf32> to vector<16x32xf32>
    %18 = arith.addf %15, %17 : vector<16x32xf32>
    %c0_13 = arith.constant 0 : index
    %c0_14 = arith.constant 0 : index
    %19 = vector.load %arg6[%c0_13, %c0_14] : memref<16x32xf32, #tpu.memory_space<vmem>>, vector<16x32xf32>
    tpu.vector_store %arg6[%c0_13, %c0_14], %18 {strides = array<i32>} : memref<16x32xf32, #tpu.memory_space<vmem>>, vector<16x32xf32>,
    return
  }
  func.func @transform_0(%arg0: i32) -> (i32, i32) {
    %c0_i32 = arith.constant 0 : i32
    %c0_i32_0 = arith.constant 0 : i32
    return %arg0, %c0_i32 : i32, i32
  }
  func.func @transform_1(%arg0: i32) -> (i32, i32) {
    %c0_i32 = arith.constant 0 : i32
    %c0_i32_0 = arith.constant 0 : i32
    %c0_i32_1 = arith.constant 0 : i32
    return %c0_i32, %c0_i32_0 : i32, i32
  }
  func.func @transform_2(%arg0: i32) -> (i32, i32) {
    %c0_i32 = arith.constant 0 : i32
    %c0_i32_0 = arith.constant 0 : i32
    %c0_i32_1 = arith.constant 0 : i32
    return %c0_i32, %c0_i32_0 : i32, i32
  }
  func.func @transform_3(%arg0: i32) -> (i32, i32) {
    %c0_i32 = arith.constant 0 : i32
    %c0_i32_0 = arith.constant 0 : i32
    %c0_i32_1 = arith.constant 0 : i32
    return %c0_i32, %c0_i32_0 : i32, i32
  }
  func.func @transform_4(%arg0: i32) -> (i32, i32) {
    %c0_i32 = arith.constant 0 : i32
    %c0_i32_0 = arith.constant 0 : i32
    %c0_i32_1 = arith.constant 0 : i32
    return %c0_i32, %c0_i32_0 : i32, i32
  }
  func.func @transform_5(%arg0: i32) -> (i32, i32) {
    %c0_i32 = arith.constant 0 : i32
    %c0_i32_0 = arith.constant 0 : i32
    return %arg0, %c0_i32 : i32, i32
  }
}

</mosaic_0001>

<llo_original>
// kernel: position_wise_feed_forward.1
$region0: #{position_wise_feed_forward.1}
  #allocation0 [shape = 'u32[]', space=smem, size = 0x4, offset = 0x4, fixed_abs, tag = 'smem constant byte address 0x4 - core index']
  #allocation1 [shape = 'u32[144,128]{1,0:T(1,128)}', space=vmem, size = 0x12000, scoped, tag = 'internal scratch']
  %s0 = inlined_call_operand.hbm [shape: f32[16,32], index: 0, kind: input, shape index: {}]
  %s1 = inlined_call_operand.hbm [shape: f32[32,64], index: 1, kind: input, shape index: {}]
  %s2 = inlined_call_operand.hbm [shape: f32[1,64], index: 2, kind: input, shape index: {}]
  %s3 = inlined_call_operand.hbm [shape: f32[64,32], index: 3, kind: input, shape index: {}]
  %s4 = inlined_call_operand.hbm [shape: f32[1,32], index: 4, kind: input, shape index: {}]
  %s5 = inlined_call_operand.hbm [shape: f32[16,32], index: 5, kind: output, shape index: {}]
  %s6 = sld [smem:[#allocation0]]
  $region50: #{position_wise_feed_forward.1} parent=0
    _
  %s8 = ssub.s32 1, %s6
  %s9 = scalar_select 0, %s8, %s6
  $region1: #{position_wise_feed_forward.1} parent=0
    #allocation2 [shape = 'u8[8192]{0}', space=vmem, size = 0x2000, scoped, tag = 'input window, operand 0, single buffered']
    #allocation3 [shape = 's32[1]{0}', space=sflag, size = 0x4, scoped, tag = 'scoped memory for position_wise_feed_forward.1']
    #allocation4 [shape = 's32[1]{0}', space=sflag, size = 0x4, scoped, tag = 'scoped memory for position_wise_feed_forward.1']
    #allocation5 [shape = 'u8[16384]{0}', space=vmem, size = 0x4000, scoped, tag = 'input window, operand 1, single buffered']
    #allocation6 [shape = 's32[1]{0}', space=sflag, size = 0x4, scoped, tag = 'scoped memory for position_wise_feed_forward.1']
    #allocation7 [shape = 'u8[512]{0}', space=vmem, size = 0x400, scoped, tag = 'input window, operand 2, single buffered']
    #allocation8 [shape = 'u8[32768]{0}', space=vmem, size = 0x8000, scoped, tag = 'input window, operand 3, single buffered']
    #allocation9 [shape = 's32[1]{0}', space=sflag, size = 0x4, scoped, tag = 'scoped memory for position_wise_feed_forward.1']
    #allocation10 [shape = 'u8[512]{0}', space=vmem, size = 0x400, scoped, tag = 'input window, operand 4, single buffered']
    #allocation11 [shape = 'u8[8192]{0}', space=vmem, size = 0x2000, scoped, tag = 'output window, operand 0, single buffered']
    %10 = vsyncpa [#allocation3], 0
    %11 = vsyncpa [#allocation6], 0
    %12 = vsyncpa [#allocation9], 0
    %13 = vsyncpa [#allocation4], 0
    // Predicated region
    $region2: #{position_wise_feed_forward.1} parent=1 // pred_check
      _
    $region3: #{position_wise_feed_forward.1} parent=1 // pred_check_branch
      %15 = sbr.rel (0) target = $region5
    $region4: #{position_wise_feed_forward.1} parent=1 // pred_region
      %s17 = ssub.s32 256, 256
      %18 = vsyncadd [#allocation3], %s17
      %s19 = sshll.u32 [#allocation2], 4
      %s20 = int_to_ptr.vmem [resolvable:$true] %s19
      %25 = dma.hbm_to_vmem [thread:$0]  %s0, 256, %s20, [#allocation3], 128, 128, 8
    $region5: #{position_wise_feed_forward.1} parent=1 // pred_fallthru
      _
    // Predicated region
    $region6: #{position_wise_feed_forward.1} parent=1 // pred_check
      _
    $region7: #{position_wise_feed_forward.1} parent=1 // pred_check_branch
      %27 = sbr.rel (0) target = $region9
    $region8: #{position_wise_feed_forward.1} parent=1 // pred_region
      %s29 = ssub.s32 512, 512
      %30 = vsyncadd [#allocation6], %s29
      %s31 = sshll.u32 [#allocation5], 4
      %s32 = int_to_ptr.vmem [resolvable:$true] %s31
      %37 = dma.hbm_to_vmem [thread:$0]  %s1, 512, %s32, [#allocation6], 128, 128, 8
    $region9: #{position_wise_feed_forward.1} parent=1 // pred_fallthru
      _
    // Predicated region
    $region10: #{position_wise_feed_forward.1} parent=1 // pred_check
      _
    $region11: #{position_wise_feed_forward.1} parent=1 // pred_check_branch
      %39 = sbr.rel (0) target = $region13
    $region12: #{position_wise_feed_forward.1} parent=1 // pred_region
      %s41 = ssub.s32 16, 16
      %42 = vsyncadd [#allocation6], %s41
      %s44 = sshll.u32 [#allocation7], 4
      %s45 = int_to_ptr.vmem [resolvable:$true] %s44
      %47 = dma.hbm_to_vmem [thread:$0]  %s2, 16, %s45, [#allocation6]
    $region13: #{position_wise_feed_forward.1} parent=1 // pred_fallthru
      _
    // Predicated region
    $region14: #{position_wise_feed_forward.1} parent=1 // pred_check
      _
    $region15: #{position_wise_feed_forward.1} parent=1 // pred_check_branch
      %49 = sbr.rel (0) target = $region17
    $region16: #{position_wise_feed_forward.1} parent=1 // pred_region
      %s51 = ssub.s32 1024, 1024
      %52 = vsyncadd [#allocation9], %s51
      %s53 = sshll.u32 [#allocation8], 4
      %s54 = int_to_ptr.vmem [resolvable:$true] %s53
      %59 = dma.hbm_to_vmem [thread:$0]  %s3, 1024, %s54, [#allocation9], 128, 128, 8
    $region17: #{position_wise_feed_forward.1} parent=1 // pred_fallthru
      _
    // Predicated region
    $region18: #{position_wise_feed_forward.1} parent=1 // pred_check
      _
    $region19: #{position_wise_feed_forward.1} parent=1 // pred_check_branch
      %61 = sbr.rel (0) target = $region21
    $region20: #{position_wise_feed_forward.1} parent=1 // pred_region
      %s63 = ssub.s32 16, 16
      %64 = vsyncadd [#allocation9], %s63
      %s66 = sshll.u32 [#allocation10], 4
      %s67 = int_to_ptr.vmem [resolvable:$true] %s66
      %69 = dma.hbm_to_vmem [thread:$0]  %s4, 16, %s67, [#allocation9]
    $region21: #{position_wise_feed_forward.1} parent=1 // pred_fallthru
      _
    // Predicated region
    $region22: #{position_wise_feed_forward.1} parent=1 // pred_check
      _
    $region23: #{position_wise_feed_forward.1} parent=1 // pred_check_branch
      %71 = sbr.rel (0) target = $region25
    $region24: #{position_wise_feed_forward.1} parent=1 // pred_region
      %72 = dma.done [#allocation3], 256
    $region25: #{position_wise_feed_forward.1} parent=1 // pred_fallthru
      _
    // Predicated region
    $region26: #{position_wise_feed_forward.1} parent=1 // pred_check
      _
    $region27: #{position_wise_feed_forward.1} parent=1 // pred_check_branch
      %74 = sbr.rel (0) target = $region29
    $region28: #{position_wise_feed_forward.1} parent=1 // pred_region
      %75 = dma.done [#allocation6], 512
    $region29: #{position_wise_feed_forward.1} parent=1 // pred_fallthru
      _
    // Predicated region
    $region30: #{position_wise_feed_forward.1} parent=1 // pred_check
      _
    $region31: #{position_wise_feed_forward.1} parent=1 // pred_check_branch
      %77 = sbr.rel (0) target = $region33
    $region32: #{position_wise_feed_forward.1} parent=1 // pred_region
      %78 = dma.done [#allocation6], 16
    $region33: #{position_wise_feed_forward.1} parent=1 // pred_fallthru
      _
    // Predicated region
    $region34: #{position_wise_feed_forward.1} parent=1 // pred_check
      _
    $region35: #{position_wise_feed_forward.1} parent=1 // pred_check_branch
      %80 = sbr.rel (0) target = $region37
    $region36: #{position_wise_feed_forward.1} parent=1 // pred_region
      %81 = dma.done [#allocation9], 1024
    $region37: #{position_wise_feed_forward.1} parent=1 // pred_fallthru
      _
    // Predicated region
    $region38: #{position_wise_feed_forward.1} parent=1 // pred_check
      _
    $region39: #{position_wise_feed_forward.1} parent=1 // pred_check_branch
      %83 = sbr.rel (0) target = $region41
    $region40: #{position_wise_feed_forward.1} parent=1 // pred_region
      %84 = dma.done [#allocation9], 16
    $region41: #{position_wise_feed_forward.1} parent=1 // pred_fallthru
      _
    %v85 = vld [vmem:[#allocation2] sm:$0xff]
    %v86 = vld [vmem:[#allocation2 + $0x8] sm:$0xff]
    %v87 = vld [vmem:[#allocation5] sm:$0xff]
    %v88 = vld [vmem:[#allocation5 + $0x8] sm:$0xff]
    %v89 = vld [vmem:[#allocation5 + $0x10] sm:$0xff]
    %v90 = vld [vmem:[#allocation5 + $0x18] sm:$0xff]
    %v91 = vld [vmem:[#allocation7] sm:$0x1]
    %v93 = vlaneseq
    %v94 = vshrl.u32 %v93, 7
    %v95 = vsub.s32 0, %v94
    %v96 = vrot.slane %v91, %v95
    %vm98 = vcmask 261120
    %v100 = vsel %vm98, %v85, 0
    %v103 = vsel %vm98, %v86, 0
    %105 = vmatprep.subr.mxu0 0.0
    %106 = vmatpush1.msra.mxu0 %v87
    %107 = vmatprep.subr.mxu0 0.0
    %108 = vmatpush1.msra.mxu0 %v88
    %109 = vmatprep.subr.mxu0 0.0
    %110 = vmatpush1.msra.mxu0 %v89
    %111 = vmatprep.subr.mxu0 0.0
    %112 = vmatpush1.msra.mxu0 %v90
    %113 = vmatprep.subr.mxu0 0.0
    %114 = vmatpush1.msra.mxu0 0.0
    %115 = vmatprep.subr.mxu0 0.0
    %116 = vmatpush1.msra.mxu0 0.0
    %117 = vmatprep.subr.mxu0 0.0
    %118 = vmatpush1.msra.mxu0 0.0
    %119 = vmatprep.subr.mxu0 0.0
    %120 = vmatpush1.msra.mxu0 0.0
    %121 = vmatprep.subr.mxu0 0.0
    %122 = vmatpush1.msra.mxu0 0.0
    %123 = vmatprep.subr.mxu0 0.0
    %124 = vmatpush1.msra.mxu0 0.0
    %125 = vmatprep.subr.mxu0 0.0
    %126 = vmatpush1.msra.mxu0 0.0
    %127 = vmatprep.subr.mxu0 0.0
    %128 = vmatpush1.msra.mxu0 0.0
    %129 = vmatprep.subr.mxu0 0.0
    %130 = vmatpush1.msra.mxu0 0.0
    %131 = vmatprep.subr.mxu0 0.0
    %132 = vmatpush1.msra.mxu0 0.0
    %133 = vmatprep.subr.mxu0 0.0
    %134 = vmatpush1.msra.mxu0 0.0
    %135 = vmatprep.subr.mxu0 0.0
    %136 = vmatpush1.msra.mxu0 0.0
    %137 = vmatprep.subr.mxu0 0.0
    %138 = vmatpush1.msra.mxu0 0.0
    %139 = vmatprep.subr.mxu0 0.0
    %140 = vmatpush1.msra.mxu0 0.0
    %141 = vmatprep.subr.mxu0 0.0
    %142 = vmatpush1.msra.mxu0 0.0
    %143 = vmatprep.subr.mxu0 0.0
    %144 = vmatpush1.msra.mxu0 0.0
    %145 = vmatprep.subr.mxu0 0.0
    %146 = vmatpush1.msra.mxu0 0.0
    %147 = vmatprep.subr.mxu0 0.0
    %148 = vmatpush1.msra.mxu0 0.0
    %149 = vmatprep.subr.mxu0 0.0
    %150 = vmatpush1.msra.mxu0 0.0
    %151 = vmatprep.subr.mxu0 0.0
    %152 = vmatpush1.msra.mxu0 0.0
    %153 = vmatprep.subr.mxu0 0.0
    %154 = vmatpush1.msra.mxu0 0.0
    %155 = vmatprep.subr.mxu0 0.0
    %156 = vmatpush1.msra.mxu0 0.0
    %157 = vmatprep.subr.mxu0 0.0
    %158 = vmatpush1.msra.mxu0 0.0
    %159 = vmatprep.subr.mxu0 0.0
    %160 = vmatpush1.msra.mxu0 0.0
    %161 = vmatprep.subr.mxu0 0.0
    %162 = vmatpush1.msra.mxu0 0.0
    %163 = vmatprep.subr.mxu0 0.0
    %164 = vmatpush1.msra.mxu0 0.0
    %165 = vmatprep.subr.mxu0 0.0
    %166 = vmatpush1.msra.mxu0 0.0
    %167 = vmatprep.subr.mxu0 0.0
    %168 = vmatpush1.msra.mxu0 0.0
    %169 = vmatprep.mubr.f32.mxu0 0.0
    %170 = vmatmul.mubr.f32.gmra.mrb[0].mxu0 %v100
    %v171 = vpop.f32.mrb[0].mxu0
    %v172 = vadd.f32 %v96, %v171
    %v173 = vpop.f32.mrb[0].mxu0
    %174 = vmatprep.mubr.f32.mxu0 0.0
    %175 = vmatmul.mubr.f32.gmra.mrb[0].mxu0 %v103
    %v176 = vpop.f32.mrb[0].mxu0
    %v177 = vadd.f32 %v96, %v176
    %v178 = vpop.f32.mrb[0].mxu0
    %179 = vdwg.mxu0
    %v180 = vmul.f32 %v172, 0.5
    %v181 = vmul.f32 %v177, 0.5
    %v182 = vmul.f32 %v172, 0.70710677
    %v183 = vmul.f32 %v177, 0.70710677
    %v184 = verf.f32.pop %v182
    %v185 = verf.f32.pop %v183
    %v186 = vadd.f32 %v184, 1.0
    %v187 = vadd.f32 %v185, 1.0
    %v188 = vmul.f32 %v180, %v186
    %v189 = vmul.f32 %v181, %v187
    %v190 = vld [vmem:[#allocation8] sm:$0xff]
    %v191 = vld [vmem:[#allocation8 + $0x8] sm:$0xff]
    %v192 = vld [vmem:[#allocation8 + $0x10] sm:$0xff]
    %v193 = vld [vmem:[#allocation8 + $0x18] sm:$0xff]
    %v194 = vld [vmem:[#allocation8 + $0x20] sm:$0xff]
    %v195 = vld [vmem:[#allocation8 + $0x28] sm:$0xff]
    %v196 = vld [vmem:[#allocation8 + $0x30] sm:$0xff]
    %v197 = vld [vmem:[#allocation8 + $0x38] sm:$0xff]
    %v198 = vld [vmem:[#allocation10] sm:$0x1]
    %v200 = vlaneseq
    %v201 = vshrl.u32 %v200, 7
    %v202 = vsub.s32 0, %v201
    %v203 = vrot.slane %v198, %v202
    %vm205 = vcmask 523264
    %v207 = vsel %vm205, %v188, 0
    %v210 = vsel %vm205, %v189, 0
    %212 = vmatprep.subr.mxu0 0.0
    %213 = vmatpush1.msra.mxu0 %v190
    %214 = vmatprep.subr.mxu0 0.0
    %215 = vmatpush1.msra.mxu0 %v191
    %216 = vmatprep.subr.mxu0 0.0
    %217 = vmatpush1.msra.mxu0 %v192
    %218 = vmatprep.subr.mxu0 0.0
    %219 = vmatpush1.msra.mxu0 %v193
    %220 = vmatprep.subr.mxu0 0.0
    %221 = vmatpush1.msra.mxu0 %v194
    %222 = vmatprep.subr.mxu0 0.0
    %223 = vmatpush1.msra.mxu0 %v195
    %224 = vmatprep.subr.mxu0 0.0
    %225 = vmatpush1.msra.mxu0 %v196
    %226 = vmatprep.subr.mxu0 0.0
    %227 = vmatpush1.msra.mxu0 %v197
    %228 = vmatprep.subr.mxu0 0.0
    %229 = vmatpush1.msra.mxu0 0.0
    %230 = vmatprep.subr.mxu0 0.0
    %231 = vmatpush1.msra.mxu0 0.0
    %232 = vmatprep.subr.mxu0 0.0
    %233 = vmatpush1.msra.mxu0 0.0
    %234 = vmatprep.subr.mxu0 0.0
    %235 = vmatpush1.msra.mxu0 0.0
    %236 = vmatprep.subr.mxu0 0.0
    %237 = vmatpush1.msra.mxu0 0.0
    %238 = vmatprep.subr.mxu0 0.0
    %239 = vmatpush1.msra.mxu0 0.0
    %240 = vmatprep.subr.mxu0 0.0
    %241 = vmatpush1.msra.mxu0 0.0
    %242 = vmatprep.subr.mxu0 0.0
    %243 = vmatpush1.msra.mxu0 0.0
    %244 = vmatprep.subr.mxu0 0.0
    %245 = vmatpush1.msra.mxu0 0.0
    %246 = vmatprep.subr.mxu0 0.0
    %247 = vmatpush1.msra.mxu0 0.0
    %248 = vmatprep.subr.mxu0 0.0
    %249 = vmatpush1.msra.mxu0 0.0
    %250 = vmatprep.subr.mxu0 0.0
    %251 = vmatpush1.msra.mxu0 0.0
    %252 = vmatprep.subr.mxu0 0.0
    %253 = vmatpush1.msra.mxu0 0.0
    %254 = vmatprep.subr.mxu0 0.0
    %255 = vmatpush1.msra.mxu0 0.0
    %256 = vmatprep.subr.mxu0 0.0
    %257 = vmatpush1.msra.mxu0 0.0
    %258 = vmatprep.subr.mxu0 0.0
    %259 = vmatpush1.msra.mxu0 0.0
    %260 = vmatprep.subr.mxu0 0.0
    %261 = vmatpush1.msra.mxu0 0.0
    %262 = vmatprep.subr.mxu0 0.0
    %263 = vmatpush1.msra.mxu0 0.0
    %264 = vmatprep.subr.mxu0 0.0
    %265 = vmatpush1.msra.mxu0 0.0
    %266 = vmatprep.subr.mxu0 0.0
    %267 = vmatpush1.msra.mxu0 0.0
    %268 = vmatprep.subr.mxu0 0.0
    %269 = vmatpush1.msra.mxu0 0.0
    %270 = vmatprep.subr.mxu0 0.0
    %271 = vmatpush1.msra.mxu0 0.0
    %272 = vmatprep.subr.mxu0 0.0
    %273 = vmatpush1.msra.mxu0 0.0
    %274 = vmatprep.subr.mxu0 0.0
    %275 = vmatpush1.msra.mxu0 0.0
    %276 = vmatprep.mubr.f32.mxu0 0.0
    %277 = vmatmul.mubr.f32.gmra.mrb[0].mxu0 %v207
    %v278 = vpop.f32.mrb[0].mxu0
    %v279 = vadd.f32 %v203, %v278
    %v280 = vpop.f32.mrb[0].mxu0
    %281 = vmatprep.mubr.f32.mxu0 0.0
    %282 = vmatmul.mubr.f32.gmra.mrb[0].mxu0 %v210
    %v283 = vpop.f32.mrb[0].mxu0
    %v284 = vadd.f32 %v203, %v283
    %v285 = vpop.f32.mrb[0].mxu0
    %286 = vdwg.mxu0
    %287 = vst.msk [vmem:[#allocation11] sm:$0xff] %vm98, %v279
    %288 = vst.msk [vmem:[#allocation11 + $0x8] sm:$0xff] %vm98, %v284
    // Predicated region
    $region42: #{position_wise_feed_forward.1} parent=1 // pred_check
      _
    $region43: #{position_wise_feed_forward.1} parent=1 // pred_check_branch
      %290 = sbr.rel (0) target = $region45
    $region44: #{position_wise_feed_forward.1} parent=1 // pred_region
      %s292 = ssub.s32 256, 256
      %293 = vsyncadd [#allocation4], %s292
      %s294 = sshll.u32 [#allocation11], 4
      %s295 = int_to_ptr.vmem [resolvable:$true] %s294
      %300 = dma.vmem_to_hbm [thread:$0]  %s295, 256, %s5, [#allocation4], 128, 128, 8
    $region45: #{position_wise_feed_forward.1} parent=1 // pred_fallthru
      _
    // Predicated region
    $region46: #{position_wise_feed_forward.1} parent=1 // pred_check
      _
    $region47: #{position_wise_feed_forward.1} parent=1 // pred_check_branch
      %302 = sbr.rel (0) target = $region49
    $region48: #{position_wise_feed_forward.1} parent=1 // pred_region
      %303 = dma.done [#allocation4], 256
    $region49: #{position_wise_feed_forward.1} parent=1 // pred_fallthru
      _
    %304 = vsyncpa [#allocation3], 1
    %305 = vsyncpa [#allocation6], 1
    %306 = vsyncpa [#allocation9], 1
    %307 = vsyncpa [#allocation4], 1

</llo_original>
